<compile_context>
chip_gen: v5e
topology: v5e:2x2
jax: 0.10.0
libtpu: 0.0.40
codegen_flags: <defaults>
</compile_context>

<pallas_src>
from functools import partial

import numpy as np

import jax
import jax.numpy as jnp
from jax.experimental import pallas as pl
from jax.experimental.pallas import tpu as pltpu


def _hash_u32(idx_u32, salt_u32):
    """Counter-based uint32 hash (murmur3-style finalizer). Pure VPU integer ops."""
    h = idx_u32 * jnp.uint32(0x9E3779B1) + salt_u32
    h = h ^ (h >> 16)
    h = h * jnp.uint32(0x85EBCA6B)
    h = h ^ (h >> 13)
    h = h * jnp.uint32(0xC2B2AE35)
    h = h ^ (h >> 16)
    return h


def _patch_dropout_kernel(seed_ref, x_ref, o_ref, *, num_keep):
    """One batch row: hash random scores, rank patches, gather the top-`num_keep`.

    seed_ref: SMEM (1,) int32     (scalar-prefetched)
    x_ref   : VMEM (n, d)         patches of this batch row
    o_ref   : VMEM (num_keep, d)  kept patches, ordered by descending random score
    """
    n = x_ref.shape[0]
    b = pl.program_id(0)

    # Per-(batch-row) salt so each row draws an independent random permutation.
    salt = (seed_ref[0] + b * jnp.int32(0x3243F6A9)).astype(jnp.uint32)

    # Patch indices laid out along lanes (i) and along sublanes (j).
    col_u = jax.lax.broadcasted_iota(jnp.uint32, (1, n), 1)   # i along lanes
    row_u = jax.lax.broadcasted_iota(jnp.uint32, (n, 1), 0)   # j along sublanes

    # Identical per-index scores materialized in both layouts -> no transpose needed.
    s_col = (_hash_u32(col_u, salt) & jnp.uint32(0x7FFFFFFF)).astype(jnp.int32)  # (1, n) s[i]
    s_row = (_hash_u32(row_u, salt) & jnp.uint32(0x7FFFFFFF)).astype(jnp.int32)  # (n, 1) s[j]

    col_i = col_u.astype(jnp.int32)
    row_i = row_u.astype(jnp.int32)

    # rank[i] = #{ j : s[j] > s[i]  or  (s[j] == s[i] and j < i) }
    # Strict total order (ties broken by index) -> ranks are a permutation of 0..n-1.
    beats = (s_row > s_col) | ((s_row == s_col) & (row_i < col_i))      # (n, n): j x i
    rank = jnp.sum(beats.astype(jnp.int32), axis=0, keepdims=True)      # (1, n)

    # One-hot selection matrix: onehot[r, i] = 1 iff rank[i] == r (patches with
    # rank >= num_keep are dropped).  Row order = descending score, like torch.topk.
    out_row = jax.lax.broadcasted_iota(jnp.int32, (num_keep, n), 0)
    onehot = (rank == out_row).astype(jnp.float32)                      # (num_keep, n)

    # Gather = one-hot matmul on the MXU; output tile is lane-dense (num_keep, d).
    o_ref[...] = jnp.dot(onehot, x_ref[...].astype(jnp.float32),
                         preferred_element_type=jnp.float32).astype(o_ref.dtype)


def patch_dropout(x, prob, *, training, seed):
    """JAX/Pallas equivalent of PatchDropout.forward for x of shape (b, n, d)."""
    assert 0.0 <= prob < 1.0
    if not training or prob == 0.0:
        return x                                    # eval mode / prob == 0 -> identity
    b, n, d = x.shape
    num_keep = max(1, int(n * (1 - prob)))
    seed_arr = jnp.asarray([seed], dtype=jnp.int32)

    return pl.pallas_call(
        partial(_patch_dropout_kernel, num_keep=num_keep),
        out_shape=jax.ShapeDtypeStruct((b, num_keep, d), x.dtype),
        grid_spec=pltpu.PrefetchScalarGridSpec(
            num_scalar_prefetch=1,                  # seed lives in SMEM
            grid=(b,),                              # one grid step per batch row
            in_specs=[pl.BlockSpec((None, n, d), lambda i, seed: (i, 0, 0))],
            out_specs=pl.BlockSpec((None, num_keep, d), lambda i, seed: (i, 0, 0)),
        ),
        compiler_params=pltpu.CompilerParams(
            dimension_semantics=("parallel",)),     # batch rows independent (megacore)
    )(seed_arr, x)


if __name__ == "__main__":
    B, N, D = 2, 16, 128          # lane-dense feature dim (multiple of 128)
    PROB = 0.5                    # keeps max(1, int(16 * 0.5)) = 8 patches -> (8, 128) tile
    K = max(1, int(N * (1 - PROB)))

    key = jax.random.PRNGKey(0)
    x = jax.random.normal(key, (B, N, D), dtype=jnp.float32)

    fwd = jax.jit(lambda v: patch_dropout(v, PROB, training=True, seed=1234))
    out = jax.block_until_ready(fwd(x))

    # ---- sanity checks ----------------------------------------------------
    assert out.shape == (B, K, D)
    assert bool(jnp.all(jnp.isfinite(out)))
    x_np, o_np = np.asarray(x), np.asarray(out)
    for bi in range(B):
        diff = np.abs(o_np[bi][:, None, :] - x_np[bi][None, :, :]).max(axis=-1)  # (K, N)
        hits = diff < 1e-4
        assert np.all(hits.sum(axis=1) == 1), "an output patch does not match any input patch"
        picked = hits.argmax(axis=1)
        assert len(set(picked.tolist())) == K, "duplicate patches were selected"

    # eval mode / prob == 0 are identities, matching the PyTorch module
    assert patch_dropout(x, PROB, training=False, seed=0) is x
    assert patch_dropout(x, 0.0, training=True, seed=0) is x

    print("KERNEL_OK")
</pallas_src>

<mosaic_0001>
module attributes {stable_mosaic.version = 11 : i64} {
  func.func @_patch_dropout_kernel(%arg0: i32, %arg1: memref<1xi32, #tpu.memory_space<smem>>, %arg2: memref<1x16x128xf32, #tpu.memory_space<vmem>>, %arg3: memref<1x8x128xf32, #tpu.memory_space<vmem>>) attributes {dimension_semantics = [#tpu.dimension_semantics<parallel>], iteration_bounds = array<i64: 2>, scalar_prefetch = 1 : i64, scratch_operands = 0 : i64, tpu.core_type = #tpu.core_type<tc>, window_params = [{transform_indices = @transform_0, window_bounds = array<i64: 1, 16, 128>}, {transform_indices = @transform_1, window_bounds = array<i64: 1, 8, 128>}]} {
    %c0 = arith.constant 0 : index
    %0 = memref.load %arg1[%c0] : memref<1xi32, #tpu.memory_space<smem>>
    %c843314857_i32 = arith.constant 843314857 : i32
    %1 = arith.muli %arg0, %c843314857_i32 : i32
    %2 = arith.addi %0, %1 : i32
    %3 = tpu.iota {dimensions = array<i32: 1>} : vector<1x16xi32>
    %4 = tpu.iota {dimensions = array<i32: 0>} : vector<16x1xi32>
    %c-1640531535_i32 = arith.constant -1640531535 : i32
    %5 = vector.broadcast %c-1640531535_i32 : i32 to vector<1x16xi32>
    %6 = arith.muli %3, %5 : vector<1x16xi32>
    %7 = vector.broadcast %2 : i32 to vector<1x16xi32>
    %8 = arith.addi %6, %7 : vector<1x16xi32>
    %c16_i32 = arith.constant 16 : i32
    %9 = vector.broadcast %c16_i32 : i32 to vector<1x16xi32>
    %10 = arith.shrui %8, %9 : vector<1x16xi32>
    %11 = arith.xori %8, %10 : vector<1x16xi32>
    %c-2048144789_i32 = arith.constant -2048144789 : i32
    %12 = vector.broadcast %c-2048144789_i32 : i32 to vector<1x16xi32>
    %13 = arith.muli %11, %12 : vector<1x16xi32>
    %c13_i32 = arith.constant 13 : i32
    %14 = vector.broadcast %c13_i32 : i32 to vector<1x16xi32>
    %15 = arith.shrui %13, %14 : vector<1x16xi32>
    %16 = arith.xori %13, %15 : vector<1x16xi32>
    %c-1028477387_i32 = arith.constant -1028477387 : i32
    %17 = vector.broadcast %c-1028477387_i32 : i32 to vector<1x16xi32>
    %18 = arith.muli %16, %17 : vector<1x16xi32>
    %c16_i32_0 = arith.constant 16 : i32
    %19 = vector.broadcast %c16_i32_0 : i32 to vector<1x16xi32>
    %20 = arith.shrui %18, %19 : vector<1x16xi32>
    %21 = arith.xori %18, %20 : vector<1x16xi32>
    %c2147483647_i32 = arith.constant 2147483647 : i32
    %22 = vector.broadcast %c2147483647_i32 : i32 to vector<1x16xi32>
    %23 = arith.andi %21, %22 : vector<1x16xi32>
    %c-1640531535_i32_1 = arith.constant -1640531535 : i32
    %24 = vector.broadcast %c-1640531535_i32_1 : i32 to vector<16x1xi32>
    %25 = arith.muli %4, %24 : vector<16x1xi32>
    %26 = vector.broadcast %2 : i32 to vector<16x1xi32>
    %27 = arith.addi %25, %26 : vector<16x1xi32>
    %c16_i32_2 = arith.constant 16 : i32
    %28 = vector.broadcast %c16_i32_2 : i32 to vector<16x1xi32>
    %29 = arith.shrui %27, %28 : vector<16x1xi32>
    %30 = arith.xori %27, %29 : vector<16x1xi32>
    %c-2048144789_i32_3 = arith.constant -2048144789 : i32
    %31 = vector.broadcast %c-2048144789_i32_3 : i32 to vector<16x1xi32>
    %32 = arith.muli %30, %31 : vector<16x1xi32>
    %c13_i32_4 = arith.constant 13 : i32
    %33 = vector.broadcast %c13_i32_4 : i32 to vector<16x1xi32>
    %34 = arith.shrui %32, %33 : vector<16x1xi32>
    %35 = arith.xori %32, %34 : vector<16x1xi32>
    %c-1028477387_i32_5 = arith.constant -1028477387 : i32
    %36 = vector.broadcast %c-1028477387_i32_5 : i32 to vector<16x1xi32>
    %37 = arith.muli %35, %36 : vector<16x1xi32>
    %c16_i32_6 = arith.constant 16 : i32
    %38 = vector.broadcast %c16_i32_6 : i32 to vector<16x1xi32>
    %39 = arith.shrui %37, %38 : vector<16x1xi32>
    %40 = arith.xori %37, %39 : vector<16x1xi32>
    %c2147483647_i32_7 = arith.constant 2147483647 : i32
    %41 = vector.broadcast %c2147483647_i32_7 : i32 to vector<16x1xi32>
    %42 = arith.andi %40, %41 : vector<16x1xi32>
    %43 = vector.broadcast %42 : vector<16x1xi32> to vector<16x16xi32>
    %44 = vector.broadcast %23 : vector<1x16xi32> to vector<16x16xi32>
    %45 = arith.cmpi sgt, %43, %44 : vector<16x16xi32>
    %46 = vector.broadcast %42 : vector<16x1xi32> to vector<16x16xi32>
    %47 = vector.broadcast %23 : vector<1x16xi32> to vector<16x16xi32>
    %48 = arith.cmpi eq, %46, %47 : vector<16x16xi32>
    %49 = vector.broadcast %4 : vector<16x1xi32> to vector<16x16xi32>
    %50 = vector.broadcast %3 : vector<1x16xi32> to vector<16x16xi32>
    %51 = arith.cmpi slt, %49, %50 : vector<16x16xi32>
    %52 = arith.andi %48, %51 : vector<16x16xi1>
    %53 = arith.ori %45, %52 : vector<16x16xi1>
    %54 = arith.extui %53 : vector<16x16xi1> to vector<16x16xi32>
    %cst = arith.constant dense<0> : vector<16xi32>
    %55 = vector.multi_reduction <add>, %54, %cst [0] : vector<16x16xi32> to vector<16xi32>
    %56 = vector.shape_cast %55 : vector<16xi32> to vector<1x16xi32>
    %57 = tpu.iota {dimensions = array<i32: 0>} : vector<8x16xi32>
    %58 = vector.broadcast %56 : vector<1x16xi32> to vector<8x16xi32>
    %59 = arith.cmpi eq, %58, %57 : vector<8x16xi32>
    %60 = arith.extui %59 : vector<8x16xi1> to vector<8x16xi32>
    %61 = arith.sitofp %60 : vector<8x16xi32> to vector<8x16xf32>
    %c0_8 = arith.constant 0 : index
    %c0_9 = arith.constant 0 : index
    %c0_10 = arith.constant 0 : index
    %62 = vector.load %arg2[%c0_8, %c0_9, %c0_10] : memref<1x16x128xf32, #tpu.memory_space<vmem>>, vector<1x16x128xf32>
    %63 = vector.shape_cast %62 : vector<1x16x128xf32> to vector<16x128xf32>
    %cst_11 = arith.constant dense<0.000000e+00> : vector<8x128xf32>
    %64 = tpu.matmul %61, %63, %cst_11 {dimension_numbers = #tpu.dot_dimension_numbers<[1], [0], [0], [1], [0, 0, 1, 1], [], []>} : vector<8x16xf32>, vector<16x128xf32>, vector<8x128xf32> -> vector<8x128xf32>
    %c0_12 = arith.constant 0 : index
    %c0_13 = arith.constant 0 : index
    %c0_14 = arith.constant 0 : index
    %65 = vector.load %arg3[%c0_12, %c0_13, %c0_14] : memref<1x8x128xf32, #tpu.memory_space<vmem>>, vector<1x8x128xf32>
    %66 = vector.shape_cast %65 : vector<1x8x128xf32> to vector<8x128xf32>
    %67 = vector.shape_cast %64 : vector<8x128xf32> to vector<1x8x128xf32>
    tpu.vector_store %arg3[%c0_12, %c0_13, %c0_14], %67 {strides = array<i32>} : memref<1x8x128xf32, #tpu.memory_space<vmem>>, vector<1x8x128xf32>,
    return
  }
  func.func @transform_0(%arg0: i32, %arg1: memref<1xi32, #tpu.memory_space<smem>>) -> (i32, i32, i32) {
    %c0_i32 = arith.constant 0 : i32
    %c0_i32_0 = arith.constant 0 : i32
    %c0_i32_1 = arith.constant 0 : i32
    return %arg0, %c0_i32, %c0_i32_0 : i32, i32, i32
  }
  func.func @transform_1(%arg0: i32, %arg1: memref<1xi32, #tpu.memory_space<smem>>) -> (i32, i32, i32) {
    %c0_i32 = arith.constant 0 : i32
    %c0_i32_0 = arith.constant 0 : i32
    %c0_i32_1 = arith.constant 0 : i32
    return %arg0, %c0_i32, %c0_i32_0 : i32, i32, i32
  }
}

</mosaic_0001>

<llo_original>
// kernel: _lambda_.1
$region0: #{_lambda_.1}
  #allocation0 [shape = 'u32[]', space=smem, size = 0x4, offset = 0x4, fixed_abs, tag = 'smem constant byte address 0x4 - core index']
  #allocation1 [shape = 'u32[72,128]{1,0:T(1,128)}', space=vmem, size = 0x9000, scoped, tag = 'internal scratch']
  #allocation2 [shape = 's32[1]{0}', space=sflag, size = 0x4, scoped, tag = 'scoped memory for _lambda_.1']
  #allocation3 [shape = 's32[1]{0:T(128)S(6)}', space=smem, size = 0x200, scoped, tag = 'prefetched SMEM operand 0']
  %s0 = inlined_call_operand.<no memory space> [shape: s32[1], index: 0, kind: input, shape index: {}]
  %s1 = inlined_call_operand.hbm [shape: f32[2,16,128], index: 1, kind: input, shape index: {}]
  %s2 = inlined_call_operand.hbm [shape: f32[2,8,128], index: 2, kind: output, shape index: {}]
  %s3 = sld [smem:[#allocation0]]
  $region41: #{_lambda_.1} parent=0
    _
  %s5 = ssub.s32 1, %s3
  %s6 = scalar_select 0, %s5, %s3
  %7 = sst [smem:[#allocation3]] %s0
  $region1: #{_lambda_.1} parent=0
    #allocation4 [shape = 'u8[16384]{0}', space=vmem, size = 0x4000, scoped, tag = 'input window, operand 1']
    #allocation5 [shape = 's32[2]{0}', space=sflag, size = 0x8, scoped, tag = 'scoped memory for _lambda_.1']
    #allocation6 [shape = 's32[2]{0}', space=sflag, size = 0x8, scoped, tag = 'scoped memory for _lambda_.1']
    #allocation7 [shape = 'u8[8192]{0}', space=vmem, size = 0x2000, scoped, tag = 'output window, operand 0']
    %8 = vsyncpa [#allocation5], 0
    %s9 = scalar_lea.sflag [#allocation5], 1
    %10 = vsyncpa %s9, 0
    %11 = vsyncpa [#allocation6], 0
    %s12 = scalar_lea.sflag [#allocation6], 1
    %13 = vsyncpa %s12, 0
    loop: start=0, step=1, limit=4
    $region2: #{_lambda_.1} parent=1 // loop_pre_header
      _
    $region3: #{_lambda_.1} parent=1 // loop_header
      %s15 = sphi 0, %s19
      %p16 = scmp.ge.s32.totalorder %s15, 4
      %s25 = sphi 0, %s27
      %s28 = sphi 0, %s25
      %s29 = sphi 0, %s28
      %s45 = sphi 0, %s29
      %s51 = sphi 0, %s53
      %s54 = sphi 0, %s51
      %s55 = sphi 0, %s54
      %s71 = sphi 0, %s55
    $region4: #{_lambda_.1} parent=1 // loop_header_branch
      %18 = sbr.rel (%p16) target = $region8
    $region5: #{_lambda_.1} parent=1 // loop_body
      %s20 = ssub.s32 %s15, 1
      %s21 = ssub.s32 %s15, 2
      %s22 = sadd.s32 %s15, 1
      %s23 = ssub.s32 %s15, %s22
      %p24 = scmp.eq.s32.totalorder %s23, 0
      %s26 = sadd.s32 %s25, 1
      %s27 = scalar_select %p24, %s25, %s26
      %p30 = pneg %p24
      %p31 = scmp.eq.s32.totalorder %s15, 1
      %p32 = por %p30, %p31
      %p33 = scmp.ne.s32.totalorder %s25, %s28
      %p34 = scmp.eq.s32.totalorder %s15, 0
      %p35 = por %p33, %p34
      %p36 = scmp.ne.s32.totalorder %s25, %s28
      %p37 = scmp.eq.s32.totalorder %s20, 1
      %p38 = por %p36, %p37
      %p39 = scmp.ne.s32.totalorder %s28, %s29
      %p40 = scmp.eq.s32.totalorder %s20, 0
      %p41 = por %p39, %p40
      %p42 = scmp.ne.s32.totalorder %s28, %s29
      %p43 = scmp.eq.s32.totalorder %s21, 1
      %p44 = por %p42, %p43
      %p46 = scmp.ne.s32.totalorder %s29, %s45
      %p47 = scmp.eq.s32.totalorder %s21, 0
      %p48 = por %p46, %p47
      %s49 = ssub.s32 %s15, %s22
      %p50 = scmp.eq.s32.totalorder %s49, 0
      %s52 = sadd.s32 %s51, 1
      %s53 = scalar_select %p50, %s51, %s52
      %p56 = pneg %p50
      %p57 = scmp.eq.s32.totalorder %s15, 1
      %p58 = por %p56, %p57
      %p59 = scmp.ne.s32.totalorder %s51, %s54
      %p60 = scmp.eq.s32.totalorder %s15, 0
      %p61 = por %p59, %p60
      %p62 = scmp.ne.s32.totalorder %s51, %s54
      %p63 = scmp.eq.s32.totalorder %s20, 1
      %p64 = por %p62, %p63
      %p65 = scmp.ne.s32.totalorder %s54, %s55
      %p66 = scmp.eq.s32.totalorder %s20, 0
      %p67 = por %p65, %p66
      %p68 = scmp.ne.s32.totalorder %s54, %s55
      %p69 = scmp.eq.s32.totalorder %s21, 1
      %p70 = por %p68, %p69
      %p72 = scmp.ne.s32.totalorder %s55, %s71
      %p73 = scmp.eq.s32.totalorder %s21, 0
      %p74 = por %p72, %p73
      %p75 = scmp.le.s32.totalorder 1, %s15
      %p76 = scmp.lt.s32.totalorder %s15, 3
      %p77 = pnand %p75, %p76
      %p78 = pneg %p77
      // Predicated region
      $region9: #{_lambda_.1} parent=5 // pred_check
        _
      $region10: #{_lambda_.1} parent=5 // pred_check_branch
        %80 = sbr.rel (%p77) target = $region12
      $region11: #{_lambda_.1} parent=5 // pred_region
        %s81 = ssub.s32 %s15, 1
      $region12: #{_lambda_.1} parent=5 // pred_fallthru
        _
      %p82 = scmp.lt.s32.totalorder %s15, 2
      // Predicated region
      $region13: #{_lambda_.1} parent=5 // pred_check
        %p83 = pneg %p82
      $region14: #{_lambda_.1} parent=5 // pred_check_branch
        %85 = sbr.rel (%p83) target = $region16
      $region15: #{_lambda_.1} parent=5 // pred_region
        // Predicated region
        $region17: #{_lambda_.1} parent=15 // pred_check
          %p86 = pneg %p35
        $region18: #{_lambda_.1} parent=15 // pred_check_branch
          %88 = sbr.rel (%p86) target = $region20
        $region19: #{_lambda_.1} parent=15 // pred_region
          %s89 = sand.u32 %s25, 1
          %s90 = scalar_lea.sflag [#allocation5], %s89
          %s91 = sand.u32 %s25, 1
          %s92 = smul.addr %s91, 16
          %s93 = scalar_lea.vmem [#allocation4], %s92
          %95 = vsyncadd %s90, 0
          %s96 = smul.addr %s15, 2
          %s97 = smul.addr %s96, 8
          %s98 = scalar_lea.hbm %s1, %s97
          %s99 = sshll.u32 %s98, 4
          %s100 = int_to_ptr.hbm [resolvable:$true] %s99
          %s101 = sshll.u32 %s93, 4
          %s102 = int_to_ptr.vmem [resolvable:$true] %s101
          %107 = dma.hbm_to_vmem [thread:$0]  %s100, 256, %s102, %s90, 128, 128, 8
        $region20: #{_lambda_.1} parent=15 // pred_fallthru
          _
      $region16: #{_lambda_.1} parent=5 // pred_fallthru
        _
      %p108 = scmp.le.s32.totalorder 1, %s15
      %p109 = scmp.lt.s32.totalorder %s15, 3
      %p110 = pnand %p108, %p109
      %p111 = pneg %p110
      // Predicated region
      $region21: #{_lambda_.1} parent=5 // pred_check
        _
      $region22: #{_lambda_.1} parent=5 // pred_check_branch
        %113 = sbr.rel (%p110) target = $region24
      $region23: #{_lambda_.1} parent=5 // pred_region
        %s114 = ssub.s32 %s15, 1
        %s115 = sand.u32 %s28, 1
        %s116 = scalar_lea.sflag [#allocation5], %s115
        %s117 = sand.u32 %s28, 1
        %s118 = smul.addr %s117, 16
        %s119 = scalar_lea.vmem [#allocation4], %s118
        // Predicated region
        $region25: #{_lambda_.1} parent=23 // pred_check
          %p120 = pneg %p41
        $region26: #{_lambda_.1} parent=23 // pred_check_branch
          %122 = sbr.rel (%p120) target = $region28
        $region27: #{_lambda_.1} parent=23 // pred_region
          %124 = dma.done %s116, 256
        $region28: #{_lambda_.1} parent=23 // pred_fallthru
          _
        %s125 = sand.u32 %s28, 1
        %s126 = scalar_lea.sflag [#allocation5], %s125
        %s127 = sand.u32 %s28, 1
        %s128 = smul.addr %s127, 16
        %s129 = scalar_lea.vmem [#allocation4], %s128
        %p130 = pneg %p41
        %p131 = pneg %p38
        %p132 = pneg %p67
        %p133 = pneg %p64
        %s134 = sand.u32 %s54, 1
        %s135 = scalar_lea.sflag [#allocation6], %s134
        %s136 = sand.u32 %s54, 1
        %s137 = smul.addr %s136, 8
        %s138 = scalar_lea.vmem [#allocation7], %s137
        %s139 = sld [smem:[#allocation3]]
        %s140 = smul.u32 %s20, 843314857
        %s141 = sadd.s32 %s139, %s140
        %v142 = vlaneseq
        %v143 = vand.u32 %v142, 127
        %v144 = vlaneseq
        %v145 = vshrl.u32 %v144, 7
        %v146 = vadd.s32 %v145, 8
        %v147 = vmul.u32 %v143, 2654435761
        %v148 = vstv %s141
        %v149 = vadd.s32 %v147, %v148
        %v150 = vshrl.u32 %v149, 16
        %v151 = vxor.u32 %v149, %v150
        %v152 = vmul.u32 %v151, 2246822507
        %v153 = vshrl.u32 %v152, 13
        %v154 = vxor.u32 %v152, %v153
        %v155 = vmul.u32 %v154, 3266489909
        %v156 = vshrl.u32 %v155, 16
        %v157 = vxor.u32 %v155, %v156
        %v158 = vand.u32 %v157, 2147483647
        %v159 = vmul.u32 %v145, 2654435761
        %v160 = vmul.u32 %v146, 2654435761
        %v161 = vadd.s32 %v159, %v148
        %v162 = vadd.s32 %v160, %v148
        %v163 = vshrl.u32 %v161, 16
        %v164 = vshrl.u32 %v162, 16
        %v165 = vxor.u32 %v161, %v163
        %v166 = vxor.u32 %v162, %v164
        %v167 = vmul.u32 %v165, 2246822507
        %v168 = vmul.u32 %v166, 2246822507
        %v169 = vshrl.u32 %v167, 13
        %v170 = vshrl.u32 %v168, 13
        %v171 = vxor.u32 %v167, %v169
        %v172 = vxor.u32 %v168, %v170
        %v173 = vmul.u32 %v171, 3266489909
        %v174 = vmul.u32 %v172, 3266489909
        %v175 = vshrl.u32 %v173, 16
        %v176 = vshrl.u32 %v174, 16
        %v177 = vxor.u32 %v173, %v175
        %v178 = vxor.u32 %v174, %v176
        %v179 = vand.u32 %v177, 2147483647
        %v180 = vand.u32 %v178, 2147483647
        %vm181 = vcmp.gt.s32.totalorder %v179, %v158
        %vm182 = vcmp.gt.s32.totalorder %v180, %v158
        %vm183 = vcmp.eq.s32.totalorder %v179, %v158
        %vm184 = vcmp.eq.s32.totalorder %v180, %v158
        %vm185 = vcmp.lt.s32.totalorder %v145, %v143
        %vm186 = vcmp.lt.s32.totalorder %v146, %v143
        %vm187 = vmand %vm183, %vm185
        %vm188 = vmand %vm184, %vm186
        %vm189 = vmor %vm181, %vm187
        %vm190 = vmor %vm182, %vm188
        %v191 = vsel %vm189, 1, 0
        %v192 = vsel %vm190, 1, 0
        %vm193 = vcmask 130048
        %v194 = vsel %vm193, %v191, 0
        %v195 = vsel %vm193, %v192, 0
        %v196 = vadd.s32 %v194, %v195
        %v197 = vrot.slane %v196, 4
        %v198 = vadd.s32 %v196, %v197
        %v199 = vrot.slane %v198, 2
        %v200 = vadd.s32 %v198, %v199
        %v201 = vrot.slane %v200, 1
        %v202 = vadd.s32 %v200, %v201
        %vm203 = vcmp.eq.s32.totalorder %v202, %v145
        %v204 = vsel %vm203, 1, 0
        %v205 = vcvt.s32.f32 %v204
        %v206 = vld [vmem:[%s119] sm:$0xff]
        %v207 = vld [vmem:[%s119 + $0x8] sm:$0xff]
        %v209 = vsel %vm193, %v205, 0
        %211 = vmatpush.msra.mxu0 0.0
        %212 = vmatpush.msra.mxu0 0.0
        %213 = vmatpush.msra.mxu0 0.0
        %214 = vmatpush.msra.mxu0 0.0
        %215 = vmatpush.msra.mxu0 0.0
        %216 = vmatpush.msra.mxu0 0.0
        %217 = vmatpush.msra.mxu0 0.0
        %218 = vmatpush.msra.mxu0 0.0
        %219 = vmatpush.msra.mxu0 0.0
        %220 = vmatpush.msra.mxu0 0.0
        %221 = vmatpush.msra.mxu0 0.0
        %222 = vmatpush.msra.mxu0 0.0
        %223 = vmatpush.msra.mxu0 0.0
        %224 = vmatpush.msra.mxu0 0.0
        %225 = vmatpush.msra.mxu0 %v207
        %226 = vmatpush.msra.mxu0 %v206
        %227 = vmatmul.f32.gmra.mxu0 %v209
        %v228 = vpop.f32.mrf.mxu0
        %v229 = vadd.f32 0.0, %v228
        %230 = vdwg.mxu0
        %231 = vst [vmem:[%s138] sm:$0xff] %v229
        %s232 = sand.u32 %s54, 1
        %s233 = scalar_lea.sflag [#allocation6], %s232
        %s234 = sand.u32 %s54, 1
        %s235 = smul.addr %s234, 8
        %s236 = scalar_lea.vmem [#allocation7], %s235
        // Predicated region
        $region29: #{_lambda_.1} parent=23 // pred_check
          %p237 = pneg %p64
        $region30: #{_lambda_.1} parent=23 // pred_check_branch
          %239 = sbr.rel (%p237) target = $region32
        $region31: #{_lambda_.1} parent=23 // pred_region
          %241 = vsyncadd %s233, 0
          %s242 = smul.addr %s20, 8
          %s243 = scalar_lea.hbm %s2, %s242
          %s245 = sshll.u32 %s236, 4
          %s246 = int_to_ptr.vmem [resolvable:$true] %s245
          %s247 = sshll.u32 %s243, 4
          %s248 = int_to_ptr.hbm [resolvable:$true] %s247
          %250 = dma.vmem_to_hbm [thread:$0]  %s246, 128, %s248, %s233
        $region32: #{_lambda_.1} parent=23 // pred_fallthru
          _
      $region24: #{_lambda_.1} parent=5 // pred_fallthru
        _
      %p251 = scmp.le.s32.totalorder 2, %s15
      // Predicated region
      $region33: #{_lambda_.1} parent=5 // pred_check
        %p252 = pneg %p251
      $region34: #{_lambda_.1} parent=5 // pred_check_branch
        %254 = sbr.rel (%p252) target = $region36
      $region35: #{_lambda_.1} parent=5 // pred_region
        %s255 = ssub.s32 %s15, 2
        // Predicated region
        $region37: #{_lambda_.1} parent=35 // pred_check
          %p256 = pneg %p70
        $region38: #{_lambda_.1} parent=35 // pred_check_branch
          %258 = sbr.rel (%p256) target = $region40
        $region39: #{_lambda_.1} parent=35 // pred_region
          %s259 = sand.u32 %s55, 1
          %s260 = scalar_lea.sflag [#allocation6], %s259
          %s261 = sand.u32 %s55, 1
          %s262 = smul.addr %s261, 8
          %s263 = scalar_lea.vmem [#allocation7], %s262
          %265 = dma.done %s260, 128
        $region40: #{_lambda_.1} parent=35 // pred_fallthru
          _
      $region36: #{_lambda_.1} parent=5 // pred_fallthru
        _
    $region6: #{_lambda_.1} parent=1 // loop_footer
      %s19 = sadd.s32 1, %s15
    $region7: #{_lambda_.1} parent=1 // loop_footer_branch
      %14 = sbr.rel target = $region3
    $region8: #{_lambda_.1} parent=1 // loop_exit
      _
    %266 = vsyncpa [#allocation5], 1
    %s267 = scalar_lea.sflag [#allocation5], 1
    %268 = vsyncpa %s267, 1
    %269 = vsyncpa [#allocation6], 1
    %s270 = scalar_lea.sflag [#allocation6], 1
    %271 = vsyncpa %s270, 1

</llo_original>
